<compile_context>
chip_gen: v5e
topology: v5e:2x2
jax: 0.10.0
libtpu: 0.0.40
codegen_flags: <defaults>
</compile_context>

<pallas_src>
import functools

import jax
import jax.numpy as jnp
from jax.experimental import pallas as pl
from jax.experimental.pallas import tpu as pltpu


HIDDEN = 64       # nn.Linear(feature_dim, 64) in the spec
_MAX_TB = 4096    # per-step VMEM at 4096 rows is still only a few MiB


def _round_up(x: int, m: int) -> int:
    return ((x + m - 1) // m) * m


def _target_grid_steps() -> int:
    """1 grid step on v5e/v6e (single TC); 2 on v7x so the 'parallel' batch
    axis can shard across both TensorCores."""
    try:
        kind = jax.devices()[0].device_kind.lower()
        if "v7" in kind:
            return 2
    except Exception:
        pass
    return 1


# ----------------------------------------------------------------------------
# Kernel: fused (Linear -> Tanh -> Linear -> Tanh) over the concatenated
# policy/value weight slabs.  x tile [TB, F], output tile [TB, P+V].
# ----------------------------------------------------------------------------
def nav_kernel(x_ref, w1_ref, b1_ref, w2_ref, b2_ref, out_ref):
    # Cast x to the weight compute dtype (no-op for f32; bf16 path on v6e/v7x).
    x = x_ref[...].astype(w1_ref.dtype)

    # layer 1: [TB, F] @ [F, 2H] + [1, 2H] -> tanh   (both branches at once)
    h = jnp.tanh(
        jnp.dot(x, w1_ref[...], preferred_element_type=jnp.float32)
        + b1_ref[...]
    ).astype(w2_ref.dtype)

    # layer 2: [TB, 2H] @ [2H, P+V] (block-diagonal) + [1, P+V] -> tanh
    y = jnp.tanh(
        jnp.dot(h, w2_ref[...], preferred_element_type=jnp.float32)
        + b2_ref[...]
    )

    out_ref[...] = y.astype(out_ref.dtype)


# ----------------------------------------------------------------------------
# Host-side packing of per-branch params into fused slabs (run ONCE).
# ----------------------------------------------------------------------------
def pack_nav_params(params):
    """Fuse policy/value weights into lane-dense slabs.

    Returns dict with:
      w1: [F, 2H]  = concat(w1p, w1v) along out-dim
      b1: [1, 2H]
      w2: [2H, P+V] block-diagonal (off-diagonal blocks are exact zeros)
      b2: [1, P+V]
      p_dim, v_dim: split sizes for the fused output
    """
    w1p, w1v = params["w1p"], params["w1v"]
    w2p, w2v = params["w2p"], params["w2v"]
    H = w1p.shape[1]
    P = w2p.shape[1]
    V = w2v.shape[1]
    dtype = w1p.dtype

    w1 = jnp.concatenate([w1p, w1v], axis=1)                      # [F, 2H]
    b1 = jnp.concatenate([params["b1p"], params["b1v"]], axis=1)  # [1, 2H]

    # Block-diagonal second layer: exact zeros off-diagonal so heads never leak.
    w2_top = jnp.concatenate([w2p, jnp.zeros((H, V), dtype)], axis=1)  # [H, P+V]
    w2_bot = jnp.concatenate([jnp.zeros((H, P), dtype), w2v], axis=1)  # [H, P+V]
    w2 = jnp.concatenate([w2_top, w2_bot], axis=0)                     # [2H, P+V]
    b2 = jnp.concatenate([params["b2p"], params["b2v"]], axis=1)       # [1, P+V]

    return dict(w1=w1, b1=b1, w2=w2, b2=b2, p_dim=int(P), v_dim=int(V))


# ----------------------------------------------------------------------------
# Jitted batch-tiled pallas_call.  Slicing of pi / vl happens inside the jit.
# ----------------------------------------------------------------------------
@functools.partial(jax.jit, static_argnames=("p_dim", "v_dim", "tb"))
def _nav_forward_packed(features, w1, b1, w2, b2, *, p_dim, v_dim, tb):
    B, F = features.shape
    N1 = w1.shape[1]          # 2 * hidden = 128
    N2 = p_dim + v_dim        # fused output width (128 by default)
    dtype = features.dtype

    TB = tb
    B_pad = _round_up(B, TB)
    x = features
    if B_pad != B:
        # Minimal sublane/tile pad (e.g. 300 -> 304), fused inside the jit.
        x = jnp.pad(features, ((0, B_pad - B), (0, 0)))

    grid = (B_pad // TB,)

    flops = 2 * B_pad * (F * N1 + N1 * N2)
    transcendentals = B_pad * (N1 + N2)            # tanh count
    bytes_accessed = 4 * (
        B_pad * F + F * N1 + N1 + N1 * N2 + N2 + B_pad * N2
    )

    out = pl.pallas_call(
        nav_kernel,
        out_shape=jax.ShapeDtypeStruct((B_pad, N2), dtype),
        grid=grid,
        in_specs=[
            pl.BlockSpec((TB, F), lambda i: (i, 0)),   # streamed per batch tile
            pl.BlockSpec((F, N1), lambda i: (0, 0)),   # weights: VMEM-resident
            pl.BlockSpec((1, N1), lambda i: (0, 0)),
            pl.BlockSpec((N1, N2), lambda i: (0, 0)),
            pl.BlockSpec((1, N2), lambda i: (0, 0)),
        ],
        out_specs=pl.BlockSpec((TB, N2), lambda i: (i, 0)),
        compiler_params=pltpu.CompilerParams(
            dimension_semantics=("parallel",),         # v7x: shard batch over 2 TCs
        ),
        cost_estimate=pl.CostEstimate(
            flops=flops,
            transcendentals=transcendentals,
            bytes_accessed=bytes_accessed,
        ),
    )(x, w1, b1, w2, b2)

    pi = out[:B, :p_dim]
    vl = out[:B, p_dim:]
    return pi, vl


# ----------------------------------------------------------------------------
# User-facing module: packs params exactly once, then only dispatches the
# jitted kernel per call.
# ----------------------------------------------------------------------------
class NavNetworkPallas:
    def __init__(self, params, *, compute_dtype=None):
        """params: per-branch dict (see init_nav_params).
        compute_dtype: optionally jnp.bfloat16 on v6e/v7x (MXU + EUP bf16);
        leave None (float32) for exact PyTorch-parity semantics."""
        packed = pack_nav_params(params)
        if compute_dtype is not None:
            for k in ("w1", "b1", "w2", "b2"):
                packed[k] = packed[k].astype(compute_dtype)
        # Commit packed slabs to device once.
        self.w1 = jax.device_put(packed["w1"])
        self.b1 = jax.device_put(packed["b1"])
        self.w2 = jax.device_put(packed["w2"])
        self.b2 = jax.device_put(packed["b2"])
        self.p_dim = packed["p_dim"]
        self.v_dim = packed["v_dim"]
        self._steps = _target_grid_steps()

    def _tile(self, B: int) -> int:
        B8 = _round_up(max(B, 1), 8)
        TB = _round_up(-(-B8 // self._steps), 8)   # ceil-div, sublane aligned
        return max(8, min(TB, _MAX_TB))

    def __call__(self, features):
        tb = self._tile(features.shape[0])
        return _nav_forward_packed(
            features, self.w1, self.b1, self.w2, self.b2,
            p_dim=self.p_dim, v_dim=self.v_dim, tb=tb,
        )

    forward = __call__

    def forward_actor(self, features):
        return self(features)[0]

    def forward_critic(self, features):
        return self(features)[1]


# ----------------------------------------------------------------------------
# Init + pure-JAX reference (matches PyTorch forward exactly).
# ----------------------------------------------------------------------------
def init_nav_params(key, feature_dim, last_layer_dim_pi=64, last_layer_dim_vf=64,
                    hidden=HIDDEN, dtype=jnp.float32):
    """Deterministic init mimicking PyTorch nn.Linear default (U[-1/sqrt(fan_in), +])."""
    keys = jax.random.split(key, 8)

    def lin(kw, kb, fan_in, fan_out):
        bound = 1.0 / jnp.sqrt(jnp.asarray(fan_in, dtype))
        w = jax.random.uniform(kw, (fan_in, fan_out), dtype, -bound, bound)
        b = jax.random.uniform(kb, (1, fan_out), dtype, -bound, bound)
        return w, b

    w1p, b1p = lin(keys[0], keys[1], feature_dim, hidden)
    w2p, b2p = lin(keys[2], keys[3], hidden, last_layer_dim_pi)
    w1v, b1v = lin(keys[4], keys[5], feature_dim, hidden)
    w2v, b2v = lin(keys[6], keys[7], hidden, last_layer_dim_vf)
    return dict(w1p=w1p, b1p=b1p, w2p=w2p, b2p=b2p,
                w1v=w1v, b1v=b1v, w2v=w2v, b2v=b2v)


def nav_network_reference(features, p):
    """Pure-JAX reference of the PyTorch forward."""
    h_pi = jnp.tanh(features @ p["w1p"] + p["b1p"])
    pi = jnp.tanh(h_pi @ p["w2p"] + p["b2p"])
    h_vl = jnp.tanh(features @ p["w1v"] + p["b1v"])
    vl = jnp.tanh(h_vl @ p["w2v"] + p["b2v"])
    return pi, vl


if __name__ == "__main__":
    B, FEATURE_DIM = 8, 32
    LAST_PI, LAST_VF = 64, 64

    key = jax.random.PRNGKey(0)
    k_feat, k_param = jax.random.split(key)

    features = jax.random.normal(k_feat, (B, FEATURE_DIM), dtype=jnp.float32)
    params = init_nav_params(k_param, FEATURE_DIM, LAST_PI, LAST_VF)

    net = NavNetworkPallas(params)            # packing happens exactly once here

    pi, vl = jax.block_until_ready(net(features))
    pi_ref, vl_ref = nav_network_reference(features, params)
    assert pi.shape == (B, LAST_PI) and vl.shape == (B, LAST_VF)
    assert jnp.allclose(pi, pi_ref, atol=1e-5), "policy branch mismatch"
    assert jnp.allclose(vl, vl_ref, atol=1e-5), "value branch mismatch"

    # Second call on the same net: no re-packing, jit cache hit.
    pi_b, vl_b = jax.block_until_ready(net(features))
    assert jnp.allclose(pi_b, pi_ref, atol=1e-5)

    # Larger, non-multiple-of-8 batch exercises the minimal-pad / tiled path.
    B2 = 300
    feats2 = jax.random.normal(jax.random.PRNGKey(3), (B2, FEATURE_DIM), jnp.float32)
    pi2, vl2 = jax.block_until_ready(net(feats2))
    pi2_ref, vl2_ref = nav_network_reference(feats2, params)
    assert pi2.shape == (B2, LAST_PI) and vl2.shape == (B2, LAST_VF)
    assert jnp.allclose(pi2, pi2_ref, atol=1e-5), "batched policy mismatch"
    assert jnp.allclose(vl2, vl2_ref, atol=1e-5), "batched value mismatch"

    # forward_actor / forward_critic equivalents of the PyTorch module.
    assert jnp.allclose(net.forward_actor(features), pi_ref, atol=1e-5)
    assert jnp.allclose(net.forward_critic(features), vl_ref, atol=1e-5)

    print("KERNEL_OK")
</pallas_src>

<mosaic_0001>
module attributes {stable_mosaic.version = 11 : i64} {
  func.func @nav_kernel(%arg0: i32, %arg1: memref<8x32xf32, #tpu.memory_space<vmem>>, %arg2: memref<32x128xf32, #tpu.memory_space<vmem>>, %arg3: memref<1x128xf32, #tpu.memory_space<vmem>>, %arg4: memref<128x128xf32, #tpu.memory_space<vmem>>, %arg5: memref<1x128xf32, #tpu.memory_space<vmem>>, %arg6: memref<8x128xf32, #tpu.memory_space<vmem>>) attributes {dimension_semantics = [#tpu.dimension_semantics<parallel>], iteration_bounds = array<i64: 1>, scalar_prefetch = 0 : i64, scratch_operands = 0 : i64, tpu.core_type = #tpu.core_type<tc>, window_params = [{transform_indices = @transform_0, window_bounds = array<i64: 8, 32>}, {pipeline_mode = #tpu.pipeline_mode<synchronous>, transform_indices = @transform_1, window_bounds = array<i64: 32, 128>}, {pipeline_mode = #tpu.pipeline_mode<synchronous>, transform_indices = @transform_2, window_bounds = array<i64: 1, 128>}, {pipeline_mode = #tpu.pipeline_mode<synchronous>, transform_indices = @transform_3, window_bounds = array<i64: 128, 128>}, {pipeline_mode = #tpu.pipeline_mode<synchronous>, transform_indices = @transform_4, window_bounds = array<i64: 1, 128>}, {transform_indices = @transform_5, window_bounds = array<i64: 8, 128>}]} {
    %c0 = arith.constant 0 : index
    %c0_0 = arith.constant 0 : index
    %0 = vector.load %arg1[%c0, %c0_0] : memref<8x32xf32, #tpu.memory_space<vmem>>, vector<8x32xf32>
    %c0_1 = arith.constant 0 : index
    %c0_2 = arith.constant 0 : index
    %1 = vector.load %arg2[%c0_1, %c0_2] : memref<32x128xf32, #tpu.memory_space<vmem>>, vector<32x128xf32>
    %cst = arith.constant dense<0.000000e+00> : vector<8x128xf32>
    %2 = tpu.matmul %0, %1, %cst {dimension_numbers = #tpu.dot_dimension_numbers<[1], [0], [0], [1], [0, 0, 1, 1], [], []>} : vector<8x32xf32>, vector<32x128xf32>, vector<8x128xf32> -> vector<8x128xf32>
    %c0_3 = arith.constant 0 : index
    %c0_4 = arith.constant 0 : index
    %3 = vector.load %arg3[%c0_3, %c0_4] : memref<1x128xf32, #tpu.memory_space<vmem>>, vector<1x128xf32>
    %4 = vector.broadcast %3 : vector<1x128xf32> to vector<8x128xf32>
    %5 = arith.addf %2, %4 : vector<8x128xf32>
    %6 = math.tanh %5 : vector<8x128xf32>
    %c0_5 = arith.constant 0 : index
    %c0_6 = arith.constant 0 : index
    %7 = vector.load %arg4[%c0_5, %c0_6] : memref<128x128xf32, #tpu.memory_space<vmem>>, vector<128x128xf32>
    %cst_7 = arith.constant dense<0.000000e+00> : vector<8x128xf32>
    %8 = tpu.matmul %6, %7, %cst_7 {dimension_numbers = #tpu.dot_dimension_numbers<[1], [0], [0], [1], [0, 0, 1, 1], [], []>} : vector<8x128xf32>, vector<128x128xf32>, vector<8x128xf32> -> vector<8x128xf32>
    %c0_8 = arith.constant 0 : index
    %c0_9 = arith.constant 0 : index
    %9 = vector.load %arg5[%c0_8, %c0_9] : memref<1x128xf32, #tpu.memory_space<vmem>>, vector<1x128xf32>
    %10 = vector.broadcast %9 : vector<1x128xf32> to vector<8x128xf32>
    %11 = arith.addf %8, %10 : vector<8x128xf32>
    %12 = math.tanh %11 : vector<8x128xf32>
    %c0_10 = arith.constant 0 : index
    %c0_11 = arith.constant 0 : index
    %13 = vector.load %arg6[%c0_10, %c0_11] : memref<8x128xf32, #tpu.memory_space<vmem>>, vector<8x128xf32>
    tpu.vector_store %arg6[%c0_10, %c0_11], %12 {strides = array<i32>} : memref<8x128xf32, #tpu.memory_space<vmem>>, vector<8x128xf32>,
    return
  }
  func.func @transform_0(%arg0: i32) -> (i32, i32) {
    %c0_i32 = arith.constant 0 : i32
    %c0_i32_0 = arith.constant 0 : i32
    return %arg0, %c0_i32 : i32, i32
  }
  func.func @transform_1(%arg0: i32) -> (i32, i32) {
    %c0_i32 = arith.constant 0 : i32
    %c0_i32_0 = arith.constant 0 : i32
    %c0_i32_1 = arith.constant 0 : i32
    return %c0_i32, %c0_i32_0 : i32, i32
  }
  func.func @transform_2(%arg0: i32) -> (i32, i32) {
    %c0_i32 = arith.constant 0 : i32
    %c0_i32_0 = arith.constant 0 : i32
    %c0_i32_1 = arith.constant 0 : i32
    return %c0_i32, %c0_i32_0 : i32, i32
  }
  func.func @transform_3(%arg0: i32) -> (i32, i32) {
    %c0_i32 = arith.constant 0 : i32
    %c0_i32_0 = arith.constant 0 : i32
    %c0_i32_1 = arith.constant 0 : i32
    return %c0_i32, %c0_i32_0 : i32, i32
  }
  func.func @transform_4(%arg0: i32) -> (i32, i32) {
    %c0_i32 = arith.constant 0 : i32
    %c0_i32_0 = arith.constant 0 : i32
    %c0_i32_1 = arith.constant 0 : i32
    return %c0_i32, %c0_i32_0 : i32, i32
  }
  func.func @transform_5(%arg0: i32) -> (i32, i32) {
    %c0_i32 = arith.constant 0 : i32
    %c0_i32_0 = arith.constant 0 : i32
    return %arg0, %c0_i32 : i32, i32
  }
}

</mosaic_0001>

<llo_original>
// kernel: _nav_forward_packed.1
$region0: #{_nav_forward_packed.1}
  #allocation0 [shape = 'u32[]', space=smem, size = 0x4, offset = 0x4, fixed_abs, tag = 'smem constant byte address 0x4 - core index']
  #allocation1 [shape = 'u32[72,128]{1,0:T(1,128)}', space=vmem, size = 0x9000, scoped, tag = 'internal scratch']
  %s0 = inlined_call_operand.hbm [shape: f32[8,32], index: 0, kind: input, shape index: {}]
  %s1 = inlined_call_operand.hbm [shape: f32[32,128], index: 1, kind: input, shape index: {}]
  %s2 = inlined_call_operand.vmem [shape: f32[1,128], index: 2, kind: input, shape index: {}]
  %s3 = inlined_call_operand.hbm [shape: f32[128,128], index: 3, kind: input, shape index: {}]
  %s4 = inlined_call_operand.vmem [shape: f32[1,128], index: 4, kind: input, shape index: {}]
  %s5 = inlined_call_operand.vmem [shape: f32[8,128], index: 5, kind: output, shape index: {}]
  %s6 = sld [smem:[#allocation0]]
  $region42: #{_nav_forward_packed.1} parent=0
    _
  %s8 = ssub.s32 1, %s6
  %s9 = scalar_select 0, %s8, %s6
  $region1: #{_nav_forward_packed.1} parent=0
    #allocation2 [shape = 'u8[4096]{0}', space=vmem, size = 0x1000, scoped, tag = 'input window, operand 0, single buffered']
    #allocation3 [shape = 's32[1]{0}', space=sflag, size = 0x4, scoped, tag = 'scoped memory for _nav_forward_packed.1']
    #allocation4 [shape = 'u8[16384]{0}', space=vmem, size = 0x4000, scoped, tag = 'input window, operand 1, single buffered']
    #allocation5 [shape = 's32[1]{0}', space=sflag, size = 0x4, scoped, tag = 'scoped memory for _nav_forward_packed.1']
    #allocation6 [shape = 'u8[65536]{0}', space=vmem, size = 0x10000, scoped, tag = 'input window, operand 3, single buffered']
    %10 = vsyncpa [#allocation3], 0
    %11 = vsyncpa [#allocation5], 0
    // Predicated region
    $region2: #{_nav_forward_packed.1} parent=1 // pred_check
      _
    $region3: #{_nav_forward_packed.1} parent=1 // pred_check_branch
      %13 = sbr.rel (0) target = $region5
    $region4: #{_nav_forward_packed.1} parent=1 // pred_region
      %15 = vsyncadd [#allocation3], 0
      %s17 = sshll.u32 %s0, 4
      %s18 = int_to_ptr.hbm [resolvable:$true] %s17
      %s19 = sshll.u32 [#allocation2], 4
      %s20 = int_to_ptr.vmem [resolvable:$true] %s19
      %22 = dma.hbm_to_vmem [thread:$0]  %s18, 128, %s20, [#allocation3]
    $region5: #{_nav_forward_packed.1} parent=1 // pred_fallthru
      _
    // Predicated region
    $region6: #{_nav_forward_packed.1} parent=1 // pred_check
      _
    $region7: #{_nav_forward_packed.1} parent=1 // pred_check_branch
      %24 = sbr.rel (0) target = $region9
    $region8: #{_nav_forward_packed.1} parent=1 // pred_region
      %26 = vsyncadd [#allocation5], 0
      %s27 = sshll.u32 %s1, 4
      %s28 = int_to_ptr.hbm [resolvable:$true] %s27
      %s29 = sshll.u32 [#allocation4], 4
      %s30 = int_to_ptr.vmem [resolvable:$true] %s29
      %35 = dma.hbm_to_vmem [thread:$0]  %s28, 512, %s30, [#allocation5], 128, 128, 8
    $region9: #{_nav_forward_packed.1} parent=1 // pred_fallthru
      _
    // Predicated region
    $region10: #{_nav_forward_packed.1} parent=1 // pred_check
      _
    $region11: #{_nav_forward_packed.1} parent=1 // pred_check_branch
      %37 = sbr.rel (0) target = $region13
    $region12: #{_nav_forward_packed.1} parent=1 // pred_region
      _
    $region13: #{_nav_forward_packed.1} parent=1 // pred_fallthru
      _
    // Predicated region
    $region14: #{_nav_forward_packed.1} parent=1 // pred_check
      _
    $region15: #{_nav_forward_packed.1} parent=1 // pred_check_branch
      %39 = sbr.rel (0) target = $region17
    $region16: #{_nav_forward_packed.1} parent=1 // pred_region
      %41 = vsyncadd [#allocation5], 0
      %s42 = sshll.u32 %s3, 4
      %s43 = int_to_ptr.hbm [resolvable:$true] %s42
      %s44 = sshll.u32 [#allocation6], 4
      %s45 = int_to_ptr.vmem [resolvable:$true] %s44
      %50 = dma.hbm_to_vmem [thread:$0]  %s43, 2048, %s45, [#allocation5], 128, 128, 8
    $region17: #{_nav_forward_packed.1} parent=1 // pred_fallthru
      _
    // Predicated region
    $region18: #{_nav_forward_packed.1} parent=1 // pred_check
      _
    $region19: #{_nav_forward_packed.1} parent=1 // pred_check_branch
      %52 = sbr.rel (0) target = $region21
    $region20: #{_nav_forward_packed.1} parent=1 // pred_region
      _
    $region21: #{_nav_forward_packed.1} parent=1 // pred_fallthru
      _
    // Predicated region
    $region22: #{_nav_forward_packed.1} parent=1 // pred_check
      _
    $region23: #{_nav_forward_packed.1} parent=1 // pred_check_branch
      %54 = sbr.rel (0) target = $region25
    $region24: #{_nav_forward_packed.1} parent=1 // pred_region
      %56 = dma.done [#allocation3], 128
    $region25: #{_nav_forward_packed.1} parent=1 // pred_fallthru
      _
    // Predicated region
    $region26: #{_nav_forward_packed.1} parent=1 // pred_check
      _
    $region27: #{_nav_forward_packed.1} parent=1 // pred_check_branch
      %58 = sbr.rel (0) target = $region29
    $region28: #{_nav_forward_packed.1} parent=1 // pred_region
      %60 = dma.done [#allocation5], 512
    $region29: #{_nav_forward_packed.1} parent=1 // pred_fallthru
      _
    // Predicated region
    $region30: #{_nav_forward_packed.1} parent=1 // pred_check
      _
    $region31: #{_nav_forward_packed.1} parent=1 // pred_check_branch
      %62 = sbr.rel (0) target = $region33
    $region32: #{_nav_forward_packed.1} parent=1 // pred_region
      %64 = dma.done [#allocation5], 2048
    $region33: #{_nav_forward_packed.1} parent=1 // pred_fallthru
      _
    %v65 = vld [vmem:[#allocation2] sm:$0xff]
    %v66 = vld [vmem:[#allocation4] sm:$0xff]
    %v67 = vld [vmem:[#allocation4 + $0x8] sm:$0xff]
    %v68 = vld [vmem:[#allocation4 + $0x10] sm:$0xff]
    %v69 = vld [vmem:[#allocation4 + $0x18] sm:$0xff]
    %v70 = vld [vmem:[%s2] sm:$0x1]
    %v72 = vperm.slane %v70, 0
    %vm74 = vcmask 261120
    %v76 = vsel %vm74, %v65, 0
    %78 = vmatpush.msra.mxu0 0.0
    %79 = vmatpush.msra.mxu0 0.0
    %80 = vmatpush.msra.mxu0 0.0
    %81 = vmatpush.msra.mxu0 0.0
    %82 = vmatpush.msra.mxu0 0.0
    %83 = vmatpush.msra.mxu0 0.0
    %84 = vmatpush.msra.mxu0 0.0
    %85 = vmatpush.msra.mxu0 0.0
    %86 = vmatpush.msra.mxu0 0.0
    %87 = vmatpush.msra.mxu0 0.0
    %88 = vmatpush.msra.mxu0 0.0
    %89 = vmatpush.msra.mxu0 0.0
    %90 = vmatpush.msra.mxu0 %v69
    %91 = vmatpush.msra.mxu0 %v68
    %92 = vmatpush.msra.mxu0 %v67
    %93 = vmatpush.msra.mxu0 %v66
    %94 = vmatmul.f32.gmra.mxu0 %v76
    %v95 = vpop.f32.mrf.mxu0
    %v96 = vadd.f32 %v72, %v95
    %97 = vdwg.mxu0
    %v98 = vtanh.pop %v96
    %v99 = vld [vmem:[#allocation6] sm:$0xff]
    %v100 = vld [vmem:[#allocation6 + $0x8] sm:$0xff]
    %v101 = vld [vmem:[#allocation6 + $0x10] sm:$0xff]
    %v102 = vld [vmem:[#allocation6 + $0x18] sm:$0xff]
    %v103 = vld [vmem:[#allocation6 + $0x20] sm:$0xff]
    %v104 = vld [vmem:[#allocation6 + $0x28] sm:$0xff]
    %v105 = vld [vmem:[#allocation6 + $0x30] sm:$0xff]
    %v106 = vld [vmem:[#allocation6 + $0x38] sm:$0xff]
    %v107 = vld [vmem:[#allocation6 + $0x40] sm:$0xff]
    %v108 = vld [vmem:[#allocation6 + $0x48] sm:$0xff]
    %v109 = vld [vmem:[#allocation6 + $0x50] sm:$0xff]
    %v110 = vld [vmem:[#allocation6 + $0x58] sm:$0xff]
    %v111 = vld [vmem:[#allocation6 + $0x60] sm:$0xff]
    %v112 = vld [vmem:[#allocation6 + $0x68] sm:$0xff]
    %v113 = vld [vmem:[#allocation6 + $0x70] sm:$0xff]
    %v114 = vld [vmem:[#allocation6 + $0x78] sm:$0xff]
    %v115 = vld [vmem:[%s4] sm:$0x1]
    %v117 = vperm.slane %v115, 0
    %119 = vmatpush.msra.mxu0 %v114
    %120 = vmatpush.msra.mxu0 %v113
    %121 = vmatpush.msra.mxu0 %v112
    %122 = vmatpush.msra.mxu0 %v111
    %123 = vmatpush.msra.mxu0 %v110
    %124 = vmatpush.msra.mxu0 %v109
    %125 = vmatpush.msra.mxu0 %v108
    %126 = vmatpush.msra.mxu0 %v107
    %127 = vmatpush.msra.mxu0 %v106
    %128 = vmatpush.msra.mxu0 %v105
    %129 = vmatpush.msra.mxu0 %v104
    %130 = vmatpush.msra.mxu0 %v103
    %131 = vmatpush.msra.mxu0 %v102
    %132 = vmatpush.msra.mxu0 %v101
    %133 = vmatpush.msra.mxu0 %v100
    %134 = vmatpush.msra.mxu0 %v99
    %135 = vmatmul.f32.gmra.mxu0 %v98
    %v136 = vpop.f32.mrf.mxu0
    %v137 = vadd.f32 %v117, %v136
    %138 = vdwg.mxu0
    %v139 = vtanh.pop %v137
    %140 = vst [vmem:[%s5] sm:$0xff] %v139
    // Predicated region
    $region34: #{_nav_forward_packed.1} parent=1 // pred_check
      _
    $region35: #{_nav_forward_packed.1} parent=1 // pred_check_branch
      %142 = sbr.rel (0) target = $region37
    $region36: #{_nav_forward_packed.1} parent=1 // pred_region
      _
    $region37: #{_nav_forward_packed.1} parent=1 // pred_fallthru
      _
    // Predicated region
    $region38: #{_nav_forward_packed.1} parent=1 // pred_check
      _
    $region39: #{_nav_forward_packed.1} parent=1 // pred_check_branch
      %144 = sbr.rel (0) target = $region41
    $region40: #{_nav_forward_packed.1} parent=1 // pred_region
      _
    $region41: #{_nav_forward_packed.1} parent=1 // pred_fallthru
      _
    %145 = vsyncpa [#allocation3], 1
    %146 = vsyncpa [#allocation5], 1

</llo_original>
